<compile_context>
chip_gen: v7x
topology: tpu7x:2x2x1
jax: 0.10.0
libtpu: 0.0.40
codegen_flags: <defaults>
</compile_context>

<pallas_src>
import jax
import jax.numpy as jnp
from jax import lax
from jax.experimental import pallas as pl
from jax.experimental.pallas import tpu as pltpu

# Problem sizes (mol.nelec, ndim=3, mol.basis.nao)
NELEC = 8
NDIM = 3
NAO = 6
NBATCH = 4

MAX_TB = 512  # batch-tile (lane) width when nbatch is large; multiple of 128


def _backflow_kernel(pos_ref, w_ref, out_ref):
    """One batch tile per grid step; batch lives on the lane (last) axis.

    pos_ref: (NDIM, NELEC, TB)       VMEM  positions, batch-last
    w_ref  : (NAO,)                  SMEM  per-orbital backflow weights
    out_ref: (NDIM, NAO, NELEC, TB)  VMEM
    """
    f32 = jnp.float32
    r = pos_ref[...].astype(f32)                       # (NDIM, NELEC, TB)
    rd = [r[d] for d in range(NDIM)]                   # NDIM x (NELEC, TB)

    # pairwise coordinate differences: dd[d][i, j, :] = r_i[d] - r_j[d]
    dds = []
    dist2 = None
    for d in range(NDIM):                              # static unroll, ndim = 3
        dd = rd[d][:, None, :] - rd[d][None, :, :]     # (NELEC, NELEC, TB)
        dds.append(dd)
        sq = dd * dd
        dist2 = sq if dist2 is None else dist2 + sq

    # off-diagonal (i != j) mask, broadcast across the batch lanes
    ii = lax.broadcasted_iota(jnp.int32, (NELEC, NELEC, 1), 0)
    jj = lax.broadcasted_iota(jnp.int32, (NELEC, NELEC, 1), 1)
    eye = (ii == jj).astype(f32)                       # (NELEC, NELEC, 1)
    mask = 1.0 - eye

    # base[i,j] = 1/r_ij off-diagonal, 0 on diagonal (fused rsqrt; no separate sqrt+div).
    # NOTE: coincident off-diagonal electrons (r_ij == 0, i != j) give inf/NaN — same
    # behavior as the PyTorch module / pure-JAX reference (no epsilon guard).
    base = mask * lax.rsqrt(dist2 + eye)               # (NELEC, NELEC, TB)

    # s[d][i,:] = sum_{j != i} base[i,j,:] * (r_i[d] - r_j[d])   (sublane reduce, no MXU)
    for d in range(NDIM):
        s_d = jnp.sum(base * dds[d], axis=1)           # (NELEC, TB)
        x_d = rd[d]                                    # (NELEC, TB)
        for o in range(NAO):                           # static unroll, nao = 6
            out_ref[d, o] = x_d + w_ref[o] * s_d       # q_i^(o) = r_i + w_o * s_i


def orbital_dependent_backflow(pos_flat, weights):
    """pos_flat: (nbatch, nelec*ndim); weights: (nao,).

    Returns (nbatch, nao, nelec*ndim) — same as the PyTorch module's _backflow.
    """
    nbatch = pos_flat.shape[0]

    # batch-last layout for the kernel: (NDIM, NELEC, nbatch)
    pos = jnp.transpose(
        pos_flat.reshape(nbatch, NELEC, NDIM).astype(jnp.float32), (2, 1, 0))
    w = weights.reshape(NAO).astype(jnp.float32)

    # batch tile: a single grid step when nbatch is small, else lane-dense MAX_TB tiles.
    if nbatch <= MAX_TB:
        tb = nbatch
        padded = nbatch
    else:
        tb = MAX_TB
        padded = ((nbatch + tb - 1) // tb) * tb
        if padded != nbatch:
            pos = jnp.pad(pos, ((0, 0), (0, 0), (0, padded - nbatch)), mode="edge")
    num_tiles = padded // tb

    out = pl.pallas_call(
        _backflow_kernel,
        out_shape=jax.ShapeDtypeStruct((NDIM, NAO, NELEC, padded), jnp.float32),
        grid_spec=pltpu.PrefetchScalarGridSpec(
            num_scalar_prefetch=0,
            grid=(num_tiles,),
            in_specs=[
                pl.BlockSpec((NDIM, NELEC, tb), lambda b: (0, 0, b)),
                pl.BlockSpec(memory_space=pltpu.MemorySpace.SMEM),
            ],
            out_specs=pl.BlockSpec((NDIM, NAO, NELEC, tb), lambda b: (0, 0, 0, b)),
        ),
        compiler_params=pltpu.CompilerParams(dimension_semantics=("parallel",)),
    )(pos, w)

    # (NDIM, NAO, NELEC, nbatch) -> (nbatch, NAO, NELEC*NDIM); single wrapper transpose.
    out = out[..., :nbatch]
    q = jnp.transpose(out, (3, 1, 2, 0))               # (nbatch, NAO, NELEC, NDIM)
    return q.reshape(nbatch, NAO, NELEC * NDIM)


def _reference(pos_flat, weights):
    """Pure-JAX reference mirroring the PyTorch _backflow semantics."""
    nbatch = pos_flat.shape[0]
    r = pos_flat.reshape(nbatch, NELEC, NDIM)
    diff = r[:, :, None, :] - r[:, None, :, :]                    # r_i - r_j
    dist = jnp.sqrt(jnp.sum(diff * diff, axis=-1))                # (nb, ne, ne)
    eye = jnp.eye(NELEC, dtype=r.dtype)
    eta = (1.0 - eye) / (dist + eye)                              # 1/r_ij off-diag
    bf = weights[None, :, None, None] * eta[:, None, :, :]        # (nb, nao, ne, ne)
    q = r[:, None, :, :] + jnp.sum(bf[..., None] * diff[:, None], axis=3)
    return q.reshape(nbatch, NAO, NELEC * NDIM)


if __name__ == "__main__":
    key = jax.random.PRNGKey(0)
    pos = jax.random.normal(key, (NBATCH, NELEC * NDIM), dtype=jnp.float32)
    # deterministic per-orbital weights (BackFlowKernelInverse default weight=1.0, perturbed)
    weights = 1.0 + 0.1 * jnp.arange(NAO, dtype=jnp.float32)

    out = orbital_dependent_backflow(pos, weights)
    out = jax.block_until_ready(out)

    ref = _reference(pos, weights)
    assert out.shape == (NBATCH, NAO, NELEC * NDIM)
    assert jnp.allclose(out, ref, rtol=1e-5, atol=1e-4), "mismatch vs pure-JAX reference"

    print("KERNEL_OK")
</pallas_src>

<mosaic_0001>
module attributes {stable_mosaic.version = 11 : i64} {
  func.func @_backflow_kernel(%arg0: i32, %arg1: memref<3x8x4xf32, #tpu.memory_space<vmem>>, %arg2: memref<6xf32, #tpu.memory_space<smem>>, %arg3: memref<3x6x8x4xf32, #tpu.memory_space<vmem>>) attributes {dimension_semantics = [#tpu.dimension_semantics<parallel>], iteration_bounds = array<i64: 1>, scalar_prefetch = 0 : i64, scratch_operands = 0 : i64, tpu.core_type = #tpu.core_type<tc>, window_params = [{transform_indices = @transform_0, window_bounds = array<i64: 3, 8, 4>}, {transform_indices = @transform_1, window_bounds = array<i64: 6>}, {transform_indices = @transform_2, window_bounds = array<i64: 3, 6, 8, 4>}]} {
    %c0 = arith.constant 0 : index
    %c0_0 = arith.constant 0 : index
    %c0_1 = arith.constant 0 : index
    %0 = vector.load %arg1[%c0, %c0_0, %c0_1] : memref<3x8x4xf32, #tpu.memory_space<vmem>>, vector<3x8x4xf32>
    %1 = vector.extract_strided_slice %0 {offsets = [0, 0, 0], sizes = [1, 8, 4], strides = [1, 1, 1]} : vector<3x8x4xf32> to vector<1x8x4xf32>
    %2 = vector.shape_cast %1 : vector<1x8x4xf32> to vector<8x4xf32>
    %3 = vector.extract_strided_slice %0 {offsets = [1, 0, 0], sizes = [1, 8, 4], strides = [1, 1, 1]} : vector<3x8x4xf32> to vector<1x8x4xf32>
    %4 = vector.shape_cast %3 : vector<1x8x4xf32> to vector<8x4xf32>
    %5 = vector.extract_strided_slice %0 {offsets = [2, 0, 0], sizes = [1, 8, 4], strides = [1, 1, 1]} : vector<3x8x4xf32> to vector<1x8x4xf32>
    %6 = vector.shape_cast %5 : vector<1x8x4xf32> to vector<8x4xf32>
    %7 = vector.shape_cast %2 : vector<8x4xf32> to vector<8x1x4xf32>
    %8 = vector.shape_cast %2 : vector<8x4xf32> to vector<1x8x4xf32>
    %9 = vector.broadcast %7 : vector<8x1x4xf32> to vector<8x8x4xf32>
    %10 = vector.broadcast %8 : vector<1x8x4xf32> to vector<8x8x4xf32>
    %11 = arith.subf %9, %10 : vector<8x8x4xf32>
    %12 = arith.mulf %11, %11 : vector<8x8x4xf32>
    %13 = vector.shape_cast %4 : vector<8x4xf32> to vector<8x1x4xf32>
    %14 = vector.shape_cast %4 : vector<8x4xf32> to vector<1x8x4xf32>
    %15 = vector.broadcast %13 : vector<8x1x4xf32> to vector<8x8x4xf32>
    %16 = vector.broadcast %14 : vector<1x8x4xf32> to vector<8x8x4xf32>
    %17 = arith.subf %15, %16 : vector<8x8x4xf32>
    %18 = arith.mulf %17, %17 : vector<8x8x4xf32>
    %19 = arith.addf %12, %18 : vector<8x8x4xf32>
    %20 = vector.shape_cast %6 : vector<8x4xf32> to vector<8x1x4xf32>
    %21 = vector.shape_cast %6 : vector<8x4xf32> to vector<1x8x4xf32>
    %22 = vector.broadcast %20 : vector<8x1x4xf32> to vector<8x8x4xf32>
    %23 = vector.broadcast %21 : vector<1x8x4xf32> to vector<8x8x4xf32>
    %24 = arith.subf %22, %23 : vector<8x8x4xf32>
    %25 = arith.mulf %24, %24 : vector<8x8x4xf32>
    %26 = arith.addf %19, %25 : vector<8x8x4xf32>
    %27 = tpu.iota {dimensions = array<i32: 0>} : vector<8x8x1xi32>
    %28 = tpu.iota {dimensions = array<i32: 1>} : vector<8x8x1xi32>
    %29 = arith.cmpi eq, %27, %28 : vector<8x8x1xi32>
    %30 = arith.extui %29 : vector<8x8x1xi1> to vector<8x8x1xi32>
    %31 = arith.sitofp %30 : vector<8x8x1xi32> to vector<8x8x1xf32>
    %cst = arith.constant 1.000000e+00 : f32
    %32 = vector.broadcast %cst : f32 to vector<8x8x1xf32>
    %33 = arith.subf %32, %31 : vector<8x8x1xf32>
    %34 = vector.broadcast %31 : vector<8x8x1xf32> to vector<8x8x4xf32>
    %35 = arith.addf %26, %34 : vector<8x8x4xf32>
    %36 = math.rsqrt %35 : vector<8x8x4xf32>
    %37 = vector.broadcast %33 : vector<8x8x1xf32> to vector<8x8x4xf32>
    %38 = arith.mulf %37, %36 : vector<8x8x4xf32>
    %39 = arith.mulf %38, %11 : vector<8x8x4xf32>
    %cst_2 = arith.constant dense<0.000000e+00> : vector<8x4xf32>
    %40 = vector.multi_reduction <add>, %39, %cst_2 [1] : vector<8x8x4xf32> to vector<8x4xf32>
    %c0_3 = arith.constant 0 : index
    %41 = memref.load %arg2[%c0_3] : memref<6xf32, #tpu.memory_space<smem>>
    %42 = vector.broadcast %41 : f32 to vector<8x4xf32>
    %43 = arith.mulf %42, %40 : vector<8x4xf32>
    %44 = arith.addf %2, %43 : vector<8x4xf32>
    %c0_4 = arith.constant 0 : index
    %c0_5 = arith.constant 0 : index
    %c0_6 = arith.constant 0 : index
    %c0_7 = arith.constant 0 : index
    %45 = vector.load %arg3[%c0_4, %c0_5, %c0_6, %c0_7] : memref<3x6x8x4xf32, #tpu.memory_space<vmem>>, vector<1x1x8x4xf32>
    %46 = vector.shape_cast %45 : vector<1x1x8x4xf32> to vector<8x4xf32>
    %47 = vector.shape_cast %44 : vector<8x4xf32> to vector<1x1x8x4xf32>
    tpu.vector_store %arg3[%c0_4, %c0_5, %c0_6, %c0_7], %47 {strides = array<i32>} : memref<3x6x8x4xf32, #tpu.memory_space<vmem>>, vector<1x1x8x4xf32>,
    %c1 = arith.constant 1 : index
    %48 = memref.load %arg2[%c1] : memref<6xf32, #tpu.memory_space<smem>>
    %49 = vector.broadcast %48 : f32 to vector<8x4xf32>
    %50 = arith.mulf %49, %40 : vector<8x4xf32>
    %51 = arith.addf %2, %50 : vector<8x4xf32>
    %c0_8 = arith.constant 0 : index
    %c1_9 = arith.constant 1 : index
    %c0_10 = arith.constant 0 : index
    %c0_11 = arith.constant 0 : index
    %52 = vector.load %arg3[%c0_8, %c1_9, %c0_10, %c0_11] : memref<3x6x8x4xf32, #tpu.memory_space<vmem>>, vector<1x1x8x4xf32>
    %53 = vector.shape_cast %52 : vector<1x1x8x4xf32> to vector<8x4xf32>
    %54 = vector.shape_cast %51 : vector<8x4xf32> to vector<1x1x8x4xf32>
    tpu.vector_store %arg3[%c0_8, %c1_9, %c0_10, %c0_11], %54 {strides = array<i32>} : memref<3x6x8x4xf32, #tpu.memory_space<vmem>>, vector<1x1x8x4xf32>,
    %c2 = arith.constant 2 : index
    %55 = memref.load %arg2[%c2] : memref<6xf32, #tpu.memory_space<smem>>
    %56 = vector.broadcast %55 : f32 to vector<8x4xf32>
    %57 = arith.mulf %56, %40 : vector<8x4xf32>
    %58 = arith.addf %2, %57 : vector<8x4xf32>
    %c0_12 = arith.constant 0 : index
    %c2_13 = arith.constant 2 : index
    %c0_14 = arith.constant 0 : index
    %c0_15 = arith.constant 0 : index
    %59 = vector.load %arg3[%c0_12, %c2_13, %c0_14, %c0_15] : memref<3x6x8x4xf32, #tpu.memory_space<vmem>>, vector<1x1x8x4xf32>
    %60 = vector.shape_cast %59 : vector<1x1x8x4xf32> to vector<8x4xf32>
    %61 = vector.shape_cast %58 : vector<8x4xf32> to vector<1x1x8x4xf32>
    tpu.vector_store %arg3[%c0_12, %c2_13, %c0_14, %c0_15], %61 {strides = array<i32>} : memref<3x6x8x4xf32, #tpu.memory_space<vmem>>, vector<1x1x8x4xf32>,
    %c3 = arith.constant 3 : index
    %62 = memref.load %arg2[%c3] : memref<6xf32, #tpu.memory_space<smem>>
    %63 = vector.broadcast %62 : f32 to vector<8x4xf32>
    %64 = arith.mulf %63, %40 : vector<8x4xf32>
    %65 = arith.addf %2, %64 : vector<8x4xf32>
    %c0_16 = arith.constant 0 : index
    %c3_17 = arith.constant 3 : index
    %c0_18 = arith.constant 0 : index
    %c0_19 = arith.constant 0 : index
    %66 = vector.load %arg3[%c0_16, %c3_17, %c0_18, %c0_19] : memref<3x6x8x4xf32, #tpu.memory_space<vmem>>, vector<1x1x8x4xf32>
    %67 = vector.shape_cast %66 : vector<1x1x8x4xf32> to vector<8x4xf32>
    %68 = vector.shape_cast %65 : vector<8x4xf32> to vector<1x1x8x4xf32>
    tpu.vector_store %arg3[%c0_16, %c3_17, %c0_18, %c0_19], %68 {strides = array<i32>} : memref<3x6x8x4xf32, #tpu.memory_space<vmem>>, vector<1x1x8x4xf32>,
    %c4 = arith.constant 4 : index
    %69 = memref.load %arg2[%c4] : memref<6xf32, #tpu.memory_space<smem>>
    %70 = vector.broadcast %69 : f32 to vector<8x4xf32>
    %71 = arith.mulf %70, %40 : vector<8x4xf32>
    %72 = arith.addf %2, %71 : vector<8x4xf32>
    %c0_20 = arith.constant 0 : index
    %c4_21 = arith.constant 4 : index
    %c0_22 = arith.constant 0 : index
    %c0_23 = arith.constant 0 : index
    %73 = vector.load %arg3[%c0_20, %c4_21, %c0_22, %c0_23] : memref<3x6x8x4xf32, #tpu.memory_space<vmem>>, vector<1x1x8x4xf32>
    %74 = vector.shape_cast %73 : vector<1x1x8x4xf32> to vector<8x4xf32>
    %75 = vector.shape_cast %72 : vector<8x4xf32> to vector<1x1x8x4xf32>
    tpu.vector_store %arg3[%c0_20, %c4_21, %c0_22, %c0_23], %75 {strides = array<i32>} : memref<3x6x8x4xf32, #tpu.memory_space<vmem>>, vector<1x1x8x4xf32>,
    %c5 = arith.constant 5 : index
    %76 = memref.load %arg2[%c5] : memref<6xf32, #tpu.memory_space<smem>>
    %77 = vector.broadcast %76 : f32 to vector<8x4xf32>
    %78 = arith.mulf %77, %40 : vector<8x4xf32>
    %79 = arith.addf %2, %78 : vector<8x4xf32>
    %c0_24 = arith.constant 0 : index
    %c5_25 = arith.constant 5 : index
    %c0_26 = arith.constant 0 : index
    %c0_27 = arith.constant 0 : index
    %80 = vector.load %arg3[%c0_24, %c5_25, %c0_26, %c0_27] : memref<3x6x8x4xf32, #tpu.memory_space<vmem>>, vector<1x1x8x4xf32>
    %81 = vector.shape_cast %80 : vector<1x1x8x4xf32> to vector<8x4xf32>
    %82 = vector.shape_cast %79 : vector<8x4xf32> to vector<1x1x8x4xf32>
    tpu.vector_store %arg3[%c0_24, %c5_25, %c0_26, %c0_27], %82 {strides = array<i32>} : memref<3x6x8x4xf32, #tpu.memory_space<vmem>>, vector<1x1x8x4xf32>,
    %83 = arith.mulf %38, %17 : vector<8x8x4xf32>
    %cst_28 = arith.constant dense<0.000000e+00> : vector<8x4xf32>
    %84 = vector.multi_reduction <add>, %83, %cst_28 [1] : vector<8x8x4xf32> to vector<8x4xf32>
    %c0_29 = arith.constant 0 : index
    %85 = memref.load %arg2[%c0_29] : memref<6xf32, #tpu.memory_space<smem>>
    %86 = vector.broadcast %85 : f32 to vector<8x4xf32>
    %87 = arith.mulf %86, %84 : vector<8x4xf32>
    %88 = arith.addf %4, %87 : vector<8x4xf32>
    %c1_30 = arith.constant 1 : index
    %c0_31 = arith.constant 0 : index
    %c0_32 = arith.constant 0 : index
    %c0_33 = arith.constant 0 : index
    %89 = vector.load %arg3[%c1_30, %c0_31, %c0_32, %c0_33] : memref<3x6x8x4xf32, #tpu.memory_space<vmem>>, vector<1x1x8x4xf32>
    %90 = vector.shape_cast %89 : vector<1x1x8x4xf32> to vector<8x4xf32>
    %91 = vector.shape_cast %88 : vector<8x4xf32> to vector<1x1x8x4xf32>
    tpu.vector_store %arg3[%c1_30, %c0_31, %c0_32, %c0_33], %91 {strides = array<i32>} : memref<3x6x8x4xf32, #tpu.memory_space<vmem>>, vector<1x1x8x4xf32>,
    %c1_34 = arith.constant 1 : index
    %92 = memref.load %arg2[%c1_34] : memref<6xf32, #tpu.memory_space<smem>>
    %93 = vector.broadcast %92 : f32 to vector<8x4xf32>
    %94 = arith.mulf %93, %84 : vector<8x4xf32>
    %95 = arith.addf %4, %94 : vector<8x4xf32>
    %c1_35 = arith.constant 1 : index
    %c1_36 = arith.constant 1 : index
    %c0_37 = arith.constant 0 : index
    %c0_38 = arith.constant 0 : index
    %96 = vector.load %arg3[%c1_35, %c1_36, %c0_37, %c0_38] : memref<3x6x8x4xf32, #tpu.memory_space<vmem>>, vector<1x1x8x4xf32>
    %97 = vector.shape_cast %96 : vector<1x1x8x4xf32> to vector<8x4xf32>
    %98 = vector.shape_cast %95 : vector<8x4xf32> to vector<1x1x8x4xf32>
    tpu.vector_store %arg3[%c1_35, %c1_36, %c0_37, %c0_38], %98 {strides = array<i32>} : memref<3x6x8x4xf32, #tpu.memory_space<vmem>>, vector<1x1x8x4xf32>,
    %c2_39 = arith.constant 2 : index
    %99 = memref.load %arg2[%c2_39] : memref<6xf32, #tpu.memory_space<smem>>
    %100 = vector.broadcast %99 : f32 to vector<8x4xf32>
    %101 = arith.mulf %100, %84 : vector<8x4xf32>
    %102 = arith.addf %4, %101 : vector<8x4xf32>
    %c1_40 = arith.constant 1 : index
    %c2_41 = arith.constant 2 : index
    %c0_42 = arith.constant 0 : index
    %c0_43 = arith.constant 0 : index
    %103 = vector.load %arg3[%c1_40, %c2_41, %c0_42, %c0_43] : memref<3x6x8x4xf32, #tpu.memory_space<vmem>>, vector<1x1x8x4xf32>
    %104 = vector.shape_cast %103 : vector<1x1x8x4xf32> to vector<8x4xf32>
    %105 = vector.shape_cast %102 : vector<8x4xf32> to vector<1x1x8x4xf32>
    tpu.vector_store %arg3[%c1_40, %c2_41, %c0_42, %c0_43], %105 {strides = array<i32>} : memref<3x6x8x4xf32, #tpu.memory_space<vmem>>, vector<1x1x8x4xf32>,
    %c3_44 = arith.constant 3 : index
    %106 = memref.load %arg2[%c3_44] : memref<6xf32, #tpu.memory_space<smem>>
    %107 = vector.broadcast %106 : f32 to vector<8x4xf32>
    %108 = arith.mulf %107, %84 : vector<8x4xf32>
    %109 = arith.addf %4, %108 : vector<8x4xf32>
    %c1_45 = arith.constant 1 : index
    %c3_46 = arith.constant 3 : index
    %c0_47 = arith.constant 0 : index
    %c0_48 = arith.constant 0 : index
    %110 = vector.load %arg3[%c1_45, %c3_46, %c0_47, %c0_48] : memref<3x6x8x4xf32, #tpu.memory_space<vmem>>, vector<1x1x8x4xf32>
    %111 = vector.shape_cast %110 : vector<1x1x8x4xf32> to vector<8x4xf32>
    %112 = vector.shape_cast %109 : vector<8x4xf32> to vector<1x1x8x4xf32>
    tpu.vector_store %arg3[%c1_45, %c3_46, %c0_47, %c0_48], %112 {strides = array<i32>} : memref<3x6x8x4xf32, #tpu.memory_space<vmem>>, vector<1x1x8x4xf32>,
    %c4_49 = arith.constant 4 : index
    %113 = memref.load %arg2[%c4_49] : memref<6xf32, #tpu.memory_space<smem>>
    %114 = vector.broadcast %113 : f32 to vector<8x4xf32>
    %115 = arith.mulf %114, %84 : vector<8x4xf32>
    %116 = arith.addf %4, %115 : vector<8x4xf32>
    %c1_50 = arith.constant 1 : index
    %c4_51 = arith.constant 4 : index
    %c0_52 = arith.constant 0 : index
    %c0_53 = arith.constant 0 : index
    %117 = vector.load %arg3[%c1_50, %c4_51, %c0_52, %c0_53] : memref<3x6x8x4xf32, #tpu.memory_space<vmem>>, vector<1x1x8x4xf32>
    %118 = vector.shape_cast %117 : vector<1x1x8x4xf32> to vector<8x4xf32>
    %119 = vector.shape_cast %116 : vector<8x4xf32> to vector<1x1x8x4xf32>
    tpu.vector_store %arg3[%c1_50, %c4_51, %c0_52, %c0_53], %119 {strides = array<i32>} : memref<3x6x8x4xf32, #tpu.memory_space<vmem>>, vector<1x1x8x4xf32>,
    %c5_54 = arith.constant 5 : index
    %120 = memref.load %arg2[%c5_54] : memref<6xf32, #tpu.memory_space<smem>>
    %121 = vector.broadcast %120 : f32 to vector<8x4xf32>
    %122 = arith.mulf %121, %84 : vector<8x4xf32>
    %123 = arith.addf %4, %122 : vector<8x4xf32>
    %c1_55 = arith.constant 1 : index
    %c5_56 = arith.constant 5 : index
    %c0_57 = arith.constant 0 : index
    %c0_58 = arith.constant 0 : index
    %124 = vector.load %arg3[%c1_55, %c5_56, %c0_57, %c0_58] : memref<3x6x8x4xf32, #tpu.memory_space<vmem>>, vector<1x1x8x4xf32>
    %125 = vector.shape_cast %124 : vector<1x1x8x4xf32> to vector<8x4xf32>
    %126 = vector.shape_cast %123 : vector<8x4xf32> to vector<1x1x8x4xf32>
    tpu.vector_store %arg3[%c1_55, %c5_56, %c0_57, %c0_58], %126 {strides = array<i32>} : memref<3x6x8x4xf32, #tpu.memory_space<vmem>>, vector<1x1x8x4xf32>,
    %127 = arith.mulf %38, %24 : vector<8x8x4xf32>
    %cst_59 = arith.constant dense<0.000000e+00> : vector<8x4xf32>
    %128 = vector.multi_reduction <add>, %127, %cst_59 [1] : vector<8x8x4xf32> to vector<8x4xf32>
    %c0_60 = arith.constant 0 : index
    %129 = memref.load %arg2[%c0_60] : memref<6xf32, #tpu.memory_space<smem>>
    %130 = vector.broadcast %129 : f32 to vector<8x4xf32>
    %131 = arith.mulf %130, %128 : vector<8x4xf32>
    %132 = arith.addf %6, %131 : vector<8x4xf32>
    %c2_61 = arith.constant 2 : index
    %c0_62 = arith.constant 0 : index
    %c0_63 = arith.constant 0 : index
    %c0_64 = arith.constant 0 : index
    %133 = vector.load %arg3[%c2_61, %c0_62, %c0_63, %c0_64] : memref<3x6x8x4xf32, #tpu.memory_space<vmem>>, vector<1x1x8x4xf32>
    %134 = vector.shape_cast %133 : vector<1x1x8x4xf32> to vector<8x4xf32>
    %135 = vector.shape_cast %132 : vector<8x4xf32> to vector<1x1x8x4xf32>
    tpu.vector_store %arg3[%c2_61, %c0_62, %c0_63, %c0_64], %135 {strides = array<i32>} : memref<3x6x8x4xf32, #tpu.memory_space<vmem>>, vector<1x1x8x4xf32>,
    %c1_65 = arith.constant 1 : index
    %136 = memref.load %arg2[%c1_65] : memref<6xf32, #tpu.memory_space<smem>>
    %137 = vector.broadcast %136 : f32 to vector<8x4xf32>
    %138 = arith.mulf %137, %128 : vector<8x4xf32>
    %139 = arith.addf %6, %138 : vector<8x4xf32>
    %c2_66 = arith.constant 2 : index
    %c1_67 = arith.constant 1 : index
    %c0_68 = arith.constant 0 : index
    %c0_69 = arith.constant 0 : index
    %140 = vector.load %arg3[%c2_66, %c1_67, %c0_68, %c0_69] : memref<3x6x8x4xf32, #tpu.memory_space<vmem>>, vector<1x1x8x4xf32>
    %141 = vector.shape_cast %140 : vector<1x1x8x4xf32> to vector<8x4xf32>
    %142 = vector.shape_cast %139 : vector<8x4xf32> to vector<1x1x8x4xf32>
    tpu.vector_store %arg3[%c2_66, %c1_67, %c0_68, %c0_69], %142 {strides = array<i32>} : memref<3x6x8x4xf32, #tpu.memory_space<vmem>>, vector<1x1x8x4xf32>,
    %c2_70 = arith.constant 2 : index
    %143 = memref.load %arg2[%c2_70] : memref<6xf32, #tpu.memory_space<smem>>
    %144 = vector.broadcast %143 : f32 to vector<8x4xf32>
    %145 = arith.mulf %144, %128 : vector<8x4xf32>
    %146 = arith.addf %6, %145 : vector<8x4xf32>
    %c2_71 = arith.constant 2 : index
    %c2_72 = arith.constant 2 : index
    %c0_73 = arith.constant 0 : index
    %c0_74 = arith.constant 0 : index
    %147 = vector.load %arg3[%c2_71, %c2_72, %c0_73, %c0_74] : memref<3x6x8x4xf32, #tpu.memory_space<vmem>>, vector<1x1x8x4xf32>
    %148 = vector.shape_cast %147 : vector<1x1x8x4xf32> to vector<8x4xf32>
    %149 = vector.shape_cast %146 : vector<8x4xf32> to vector<1x1x8x4xf32>
    tpu.vector_store %arg3[%c2_71, %c2_72, %c0_73, %c0_74], %149 {strides = array<i32>} : memref<3x6x8x4xf32, #tpu.memory_space<vmem>>, vector<1x1x8x4xf32>,
    %c3_75 = arith.constant 3 : index
    %150 = memref.load %arg2[%c3_75] : memref<6xf32, #tpu.memory_space<smem>>
    %151 = vector.broadcast %150 : f32 to vector<8x4xf32>
    %152 = arith.mulf %151, %128 : vector<8x4xf32>
    %153 = arith.addf %6, %152 : vector<8x4xf32>
    %c2_76 = arith.constant 2 : index
    %c3_77 = arith.constant 3 : index
    %c0_78 = arith.constant 0 : index
    %c0_79 = arith.constant 0 : index
    %154 = vector.load %arg3[%c2_76, %c3_77, %c0_78, %c0_79] : memref<3x6x8x4xf32, #tpu.memory_space<vmem>>, vector<1x1x8x4xf32>
    %155 = vector.shape_cast %154 : vector<1x1x8x4xf32> to vector<8x4xf32>
    %156 = vector.shape_cast %153 : vector<8x4xf32> to vector<1x1x8x4xf32>
    tpu.vector_store %arg3[%c2_76, %c3_77, %c0_78, %c0_79], %156 {strides = array<i32>} : memref<3x6x8x4xf32, #tpu.memory_space<vmem>>, vector<1x1x8x4xf32>,
    %c4_80 = arith.constant 4 : index
    %157 = memref.load %arg2[%c4_80] : memref<6xf32, #tpu.memory_space<smem>>
    %158 = vector.broadcast %157 : f32 to vector<8x4xf32>
    %159 = arith.mulf %158, %128 : vector<8x4xf32>
    %160 = arith.addf %6, %159 : vector<8x4xf32>
    %c2_81 = arith.constant 2 : index
    %c4_82 = arith.constant 4 : index
    %c0_83 = arith.constant 0 : index
    %c0_84 = arith.constant 0 : index
    %161 = vector.load %arg3[%c2_81, %c4_82, %c0_83, %c0_84] : memref<3x6x8x4xf32, #tpu.memory_space<vmem>>, vector<1x1x8x4xf32>
    %162 = vector.shape_cast %161 : vector<1x1x8x4xf32> to vector<8x4xf32>
    %163 = vector.shape_cast %160 : vector<8x4xf32> to vector<1x1x8x4xf32>
    tpu.vector_store %arg3[%c2_81, %c4_82, %c0_83, %c0_84], %163 {strides = array<i32>} : memref<3x6x8x4xf32, #tpu.memory_space<vmem>>, vector<1x1x8x4xf32>,
    %c5_85 = arith.constant 5 : index
    %164 = memref.load %arg2[%c5_85] : memref<6xf32, #tpu.memory_space<smem>>
    %165 = vector.broadcast %164 : f32 to vector<8x4xf32>
    %166 = arith.mulf %165, %128 : vector<8x4xf32>
    %167 = arith.addf %6, %166 : vector<8x4xf32>
    %c2_86 = arith.constant 2 : index
    %c5_87 = arith.constant 5 : index
    %c0_88 = arith.constant 0 : index
    %c0_89 = arith.constant 0 : index
    %168 = vector.load %arg3[%c2_86, %c5_87, %c0_88, %c0_89] : memref<3x6x8x4xf32, #tpu.memory_space<vmem>>, vector<1x1x8x4xf32>
    %169 = vector.shape_cast %168 : vector<1x1x8x4xf32> to vector<8x4xf32>
    %170 = vector.shape_cast %167 : vector<8x4xf32> to vector<1x1x8x4xf32>
    tpu.vector_store %arg3[%c2_86, %c5_87, %c0_88, %c0_89], %170 {strides = array<i32>} : memref<3x6x8x4xf32, #tpu.memory_space<vmem>>, vector<1x1x8x4xf32>,
    return
  }
  func.func @transform_0(%arg0: i32) -> (i32, i32, i32) {
    %c0_i32 = arith.constant 0 : i32
    %c0_i32_0 = arith.constant 0 : i32
    %c0_i32_1 = arith.constant 0 : i32
    return %c0_i32, %c0_i32_0, %arg0 : i32, i32, i32
  }
  func.func @transform_1(%arg0: i32) -> i32 {
    %c0_i32 = arith.constant 0 : i32
    %c0_i32_0 = arith.constant 0 : i32
    return %c0_i32 : i32
  }
  func.func @transform_2(%arg0: i32) -> (i32, i32, i32, i32) {
    %c0_i32 = arith.constant 0 : i32
    %c0_i32_0 = arith.constant 0 : i32
    %c0_i32_1 = arith.constant 0 : i32
    %c0_i32_2 = arith.constant 0 : i32
    return %c0_i32, %c0_i32_0, %c0_i32_1, %arg0 : i32, i32, i32, i32
  }
}

</mosaic_0001>

<llo_original>
// kernel: tpu_custom_call.1
$region0: #{tpu_custom_call.1}
  #allocation0 [shape = 'u32[]', space=smem, size = 0x4, offset = 0x4, fixed_abs, tag = 'smem constant byte address 0x4 - core index']
  #allocation1 [shape = 'u32[144,128]{1,0:T(1,128)}', space=vmem, size = 0x12000, scoped, tag = 'internal scratch']
  %s0 = inlined_call_operand.vmem [shape: f32[3,8,4], index: 0, kind: input, shape index: {}]
  %s1 = inlined_call_operand.vmem [shape: f32[6], index: 1, kind: input, shape index: {}]
  %s2 = inlined_call_operand.vmem [shape: f32[3,6,8,4], index: 2, kind: output, shape index: {}]
  %s3 = sld [smem:[#allocation0]]
  $region22: #{tpu_custom_call.1} parent=0
    _
  %s5 = ssub.s32 1, %s3
  %s6 = scalar_select 0, %s5, %s3
  $region1: #{tpu_custom_call.1} parent=0
    #allocation2 [shape = 'u8[512]{0}', space=smem, size = 0x200, scoped, tag = 'input window, operand 1, single buffered']
    #allocation3 [shape = 's32[1]{0}', space=sflag, size = 0x4, scoped, tag = 'scoped memory for tpu_custom_call.1']
    %7 = vsyncpa [#allocation3], 0
    // Predicated region
    $region2: #{tpu_custom_call.1} parent=1 // pred_check
      _
    $region3: #{tpu_custom_call.1} parent=1 // pred_check_branch
      %9 = sbr.rel (0) target = $region5
    $region4: #{tpu_custom_call.1} parent=1 // pred_region
      _
    $region5: #{tpu_custom_call.1} parent=1 // pred_fallthru
      _
    // Predicated region
    $region6: #{tpu_custom_call.1} parent=1 // pred_check
      _
    $region7: #{tpu_custom_call.1} parent=1 // pred_check_branch
      %11 = sbr.rel (0) target = $region9
    $region8: #{tpu_custom_call.1} parent=1 // pred_region
      %s13 = ssub.s32 16, 16
      %14 = vsyncadd [#allocation3], %s13
      %s16 = sshll.u32 %s1, 4
      %s17 = int_to_ptr.vmem [resolvable:$true] %s16
      %19 = dma.vmem_to_smem %s17, 16, [#allocation2], [#allocation3]
    $region9: #{tpu_custom_call.1} parent=1 // pred_fallthru
      _
    // Predicated region
    $region10: #{tpu_custom_call.1} parent=1 // pred_check
      _
    $region11: #{tpu_custom_call.1} parent=1 // pred_check_branch
      %21 = sbr.rel (0) target = $region13
    $region12: #{tpu_custom_call.1} parent=1 // pred_region
      %22 = dma.done [#allocation3], 16
    $region13: #{tpu_custom_call.1} parent=1 // pred_fallthru
      _
    %23 = sfence
    %v24 = vld [vmem:[%s0] sm:$0xff]
    %v25 = vld [vmem:[%s0 + $0x8] sm:$0xff]
    %v26 = vld [vmem:[%s0 + $0x10] sm:$0xff]
    %v28 = vcombine.high %v24, %v24
    %v30 = vunpack.c.l.s4 1966171168
    %v31 = vunpack.c.0.s8 %v30
    %v32 = vlaneseq
    %v33 = vshrl.u32 %v32, 7
    %v34 = vsub.s32 %v31, %v33
    %v35 = vrot.slane %v24, %v34
    %v37 = vunpack.c.l.s4 1966171168
    %v38 = vunpack.c.0.s8 %v37
    %v39 = vlaneseq
    %v40 = vshrl.u32 %v39, 7
    %v41 = vsub.s32 %v38, %v40
    %v42 = vrot.slane %v28, %v41
    %v43 = vcombine.high %v35, %v35
    %v44 = vcombine.high %v42, %v42
    %v46 = vunpack.c.l.s4 1966171168
    %v47 = vunpack.c.0.s8 %v46
    %v48 = vlaneseq
    %v49 = vshrl.u32 %v48, 7
    %v50 = vsub.s32 %v47, %v49
    %v51 = vrot.slane %v35, %v50
    %v53 = vunpack.c.l.s4 1966171168
    %v54 = vunpack.c.0.s8 %v53
    %v55 = vlaneseq
    %v56 = vshrl.u32 %v55, 7
    %v57 = vsub.s32 %v54, %v56
    %v58 = vrot.slane %v42, %v57
    %v60 = vunpack.c.l.s4 1966171168
    %v61 = vunpack.c.0.s8 %v60
    %v62 = vlaneseq
    %v63 = vshrl.u32 %v62, 7
    %v64 = vsub.s32 %v61, %v63
    %v65 = vrot.slane %v43, %v64
    %v67 = vunpack.c.l.s4 1966171168
    %v68 = vunpack.c.0.s8 %v67
    %v69 = vlaneseq
    %v70 = vshrl.u32 %v69, 7
    %v71 = vsub.s32 %v68, %v70
    %v72 = vrot.slane %v44, %v71
    %v73 = vcombine.high %v51, %v51
    %v74 = vcombine.high %v58, %v58
    %v75 = vcombine.high %v65, %v65
    %v76 = vcombine.high %v72, %v72
    %v77 = vlaneseq
    %v78 = vshrl.u32 %v77, 7
    %v79 = vsub.s32 0, %v78
    %v80 = vrot.slane %v51, %v79
    %v81 = vlaneseq
    %v82 = vshrl.u32 %v81, 7
    %v83 = vsub.s32 0, %v82
    %v84 = vrot.slane %v65, %v83
    %v85 = vlaneseq
    %v86 = vshrl.u32 %v85, 7
    %v87 = vsub.s32 0, %v86
    %v88 = vrot.slane %v73, %v87
    %v89 = vlaneseq
    %v90 = vshrl.u32 %v89, 7
    %v91 = vsub.s32 0, %v90
    %v92 = vrot.slane %v75, %v91
    %v93 = vlaneseq
    %v94 = vshrl.u32 %v93, 7
    %v95 = vsub.s32 0, %v94
    %v96 = vrot.slane %v58, %v95
    %v97 = vlaneseq
    %v98 = vshrl.u32 %v97, 7
    %v99 = vsub.s32 0, %v98
    %v100 = vrot.slane %v72, %v99
    %v101 = vlaneseq
    %v102 = vshrl.u32 %v101, 7
    %v103 = vsub.s32 0, %v102
    %v104 = vrot.slane %v74, %v103
    %v105 = vlaneseq
    %v106 = vshrl.u32 %v105, 7
    %v107 = vsub.s32 0, %v106
    %v108 = vrot.slane %v76, %v107
    %v117 = vsub.f32 %v80, %v24
    %v118 = vsub.f32 %v84, %v24
    %v119 = vsub.f32 %v88, %v24
    %v120 = vsub.f32 %v92, %v24
    %v121 = vsub.f32 %v96, %v24
    %v122 = vsub.f32 %v100, %v24
    %v123 = vsub.f32 %v104, %v24
    %v124 = vsub.f32 %v108, %v24
    %v125 = vmul.f32 %v117, %v117
    %v126 = vmul.f32 %v118, %v118
    %v127 = vmul.f32 %v119, %v119
    %v128 = vmul.f32 %v120, %v120
    %v129 = vmul.f32 %v121, %v121
    %v130 = vmul.f32 %v122, %v122
    %v131 = vmul.f32 %v123, %v123
    %v132 = vmul.f32 %v124, %v124
    %v134 = vcombine.high %v25, %v25
    %v136 = vunpack.c.l.s4 1966171168
    %v137 = vunpack.c.0.s8 %v136
    %v138 = vlaneseq
    %v139 = vshrl.u32 %v138, 7
    %v140 = vsub.s32 %v137, %v139
    %v141 = vrot.slane %v25, %v140
    %v143 = vunpack.c.l.s4 1966171168
    %v144 = vunpack.c.0.s8 %v143
    %v145 = vlaneseq
    %v146 = vshrl.u32 %v145, 7
    %v147 = vsub.s32 %v144, %v146
    %v148 = vrot.slane %v134, %v147
    %v149 = vcombine.high %v141, %v141
    %v150 = vcombine.high %v148, %v148
    %v152 = vunpack.c.l.s4 1966171168
    %v153 = vunpack.c.0.s8 %v152
    %v154 = vlaneseq
    %v155 = vshrl.u32 %v154, 7
    %v156 = vsub.s32 %v153, %v155
    %v157 = vrot.slane %v141, %v156
    %v159 = vunpack.c.l.s4 1966171168
    %v160 = vunpack.c.0.s8 %v159
    %v161 = vlaneseq
    %v162 = vshrl.u32 %v161, 7
    %v163 = vsub.s32 %v160, %v162
    %v164 = vrot.slane %v148, %v163
    %v166 = vunpack.c.l.s4 1966171168
    %v167 = vunpack.c.0.s8 %v166
    %v168 = vlaneseq
    %v169 = vshrl.u32 %v168, 7
    %v170 = vsub.s32 %v167, %v169
    %v171 = vrot.slane %v149, %v170
    %v173 = vunpack.c.l.s4 1966171168
    %v174 = vunpack.c.0.s8 %v173
    %v175 = vlaneseq
    %v176 = vshrl.u32 %v175, 7
    %v177 = vsub.s32 %v174, %v176
    %v178 = vrot.slane %v150, %v177
    %v179 = vcombine.high %v157, %v157
    %v180 = vcombine.high %v164, %v164
    %v181 = vcombine.high %v171, %v171
    %v182 = vcombine.high %v178, %v178
    %v183 = vlaneseq
    %v184 = vshrl.u32 %v183, 7
    %v185 = vsub.s32 0, %v184
    %v186 = vrot.slane %v157, %v185
    %v187 = vlaneseq
    %v188 = vshrl.u32 %v187, 7
    %v189 = vsub.s32 0, %v188
    %v190 = vrot.slane %v171, %v189
    %v191 = vlaneseq
    %v192 = vshrl.u32 %v191, 7
    %v193 = vsub.s32 0, %v192
    %v194 = vrot.slane %v179, %v193
    %v195 = vlaneseq
    %v196 = vshrl.u32 %v195, 7
    %v197 = vsub.s32 0, %v196
    %v198 = vrot.slane %v181, %v197
    %v199 = vlaneseq
    %v200 = vshrl.u32 %v199, 7
    %v201 = vsub.s32 0, %v200
    %v202 = vrot.slane %v164, %v201
    %v203 = vlaneseq
    %v204 = vshrl.u32 %v203, 7
    %v205 = vsub.s32 0, %v204
    %v206 = vrot.slane %v178, %v205
    %v207 = vlaneseq
    %v208 = vshrl.u32 %v207, 7
    %v209 = vsub.s32 0, %v208
    %v210 = vrot.slane %v180, %v209
    %v211 = vlaneseq
    %v212 = vshrl.u32 %v211, 7
    %v213 = vsub.s32 0, %v212
    %v214 = vrot.slane %v182, %v213
    %v223 = vsub.f32 %v186, %v25
    %v224 = vsub.f32 %v190, %v25
    %v225 = vsub.f32 %v194, %v25
    %v226 = vsub.f32 %v198, %v25
    %v227 = vsub.f32 %v202, %v25
    %v228 = vsub.f32 %v206, %v25
    %v229 = vsub.f32 %v210, %v25
    %v230 = vsub.f32 %v214, %v25
    %v231 = vmul.f32 %v223, %v223
    %v232 = vmul.f32 %v224, %v224
    %v233 = vmul.f32 %v225, %v225
    %v234 = vmul.f32 %v226, %v226
    %v235 = vmul.f32 %v227, %v227
    %v236 = vmul.f32 %v228, %v228
    %v237 = vmul.f32 %v229, %v229
    %v238 = vmul.f32 %v230, %v230
    %v239 = vadd.f32 %v125, %v231
    %v240 = vadd.f32 %v126, %v232
    %v241 = vadd.f32 %v127, %v233
    %v242 = vadd.f32 %v128, %v234
    %v243 = vadd.f32 %v129, %v235
    %v244 = vadd.f32 %v130, %v236
    %v245 = vadd.f32 %v131, %v237
    %v246 = vadd.f32 %v132, %v238
    %v248 = vcombine.high %v26, %v26
    %v250 = vunpack.c.l.s4 1966171168
    %v251 = vunpack.c.0.s8 %v250
    %v252 = vlaneseq
    %v253 = vshrl.u32 %v252, 7
    %v254 = vsub.s32 %v251, %v253
    %v255 = vrot.slane %v26, %v254
    %v257 = vunpack.c.l.s4 1966171168
    %v258 = vunpack.c.0.s8 %v257
    %v259 = vlaneseq
    %v260 = vshrl.u32 %v259, 7
    %v261 = vsub.s32 %v258, %v260
    %v262 = vrot.slane %v248, %v261
    %v263 = vcombine.high %v255, %v255
    %v264 = vcombine.high %v262, %v262
    %v266 = vunpack.c.l.s4 1966171168
    %v267 = vunpack.c.0.s8 %v266
    %v268 = vlaneseq
    %v269 = vshrl.u32 %v268, 7
    %v270 = vsub.s32 %v267, %v269
    %v271 = vrot.slane %v255, %v270
    %v273 = vunpack.c.l.s4 1966171168
    %v274 = vunpack.c.0.s8 %v273
    %v275 = vlaneseq
    %v276 = vshrl.u32 %v275, 7
    %v277 = vsub.s32 %v274, %v276
    %v278 = vrot.slane %v262, %v277
    %v280 = vunpack.c.l.s4 1966171168
    %v281 = vunpack.c.0.s8 %v280
    %v282 = vlaneseq
    %v283 = vshrl.u32 %v282, 7
    %v284 = vsub.s32 %v281, %v283
    %v285 = vrot.slane %v263, %v284
    %v287 = vunpack.c.l.s4 1966171168
    %v288 = vunpack.c.0.s8 %v287
    %v289 = vlaneseq
    %v290 = vshrl.u32 %v289, 7
    %v291 = vsub.s32 %v288, %v290
    %v292 = vrot.slane %v264, %v291
    %v293 = vcombine.high %v271, %v271
    %v294 = vcombine.high %v278, %v278
    %v295 = vcombine.high %v285, %v285
    %v296 = vcombine.high %v292, %v292
    %v297 = vlaneseq
    %v298 = vshrl.u32 %v297, 7
    %v299 = vsub.s32 0, %v298
    %v300 = vrot.slane %v271, %v299
    %v301 = vlaneseq
    %v302 = vshrl.u32 %v301, 7
    %v303 = vsub.s32 0, %v302
    %v304 = vrot.slane %v285, %v303
    %v305 = vlaneseq
    %v306 = vshrl.u32 %v305, 7
    %v307 = vsub.s32 0, %v306
    %v308 = vrot.slane %v293, %v307
    %v309 = vlaneseq
    %v310 = vshrl.u32 %v309, 7
    %v311 = vsub.s32 0, %v310
    %v312 = vrot.slane %v295, %v311
    %v313 = vlaneseq
    %v314 = vshrl.u32 %v313, 7
    %v315 = vsub.s32 0, %v314
    %v316 = vrot.slane %v278, %v315
    %v317 = vlaneseq
    %v318 = vshrl.u32 %v317, 7
    %v319 = vsub.s32 0, %v318
    %v320 = vrot.slane %v292, %v319
    %v321 = vlaneseq
    %v322 = vshrl.u32 %v321, 7
    %v323 = vsub.s32 0, %v322
    %v324 = vrot.slane %v294, %v323
    %v325 = vlaneseq
    %v326 = vshrl.u32 %v325, 7
    %v327 = vsub.s32 0, %v326
    %v328 = vrot.slane %v296, %v327
    %v337 = vsub.f32 %v300, %v26
    %v338 = vsub.f32 %v304, %v26
    %v339 = vsub.f32 %v308, %v26
    %v340 = vsub.f32 %v312, %v26
    %v341 = vsub.f32 %v316, %v26
    %v342 = vsub.f32 %v320, %v26
    %v343 = vsub.f32 %v324, %v26
    %v344 = vsub.f32 %v328, %v26
    %v345 = vmul.f32 %v337, %v337
    %v346 = vmul.f32 %v338, %v338
    %v347 = vmul.f32 %v339, %v339
    %v348 = vmul.f32 %v340, %v340
    %v349 = vmul.f32 %v341, %v341
    %v350 = vmul.f32 %v342, %v342
    %v351 = vmul.f32 %v343, %v343
    %v352 = vmul.f32 %v344, %v344
    %v353 = vadd.f32 %v239, %v345
    %v354 = vadd.f32 %v240, %v346
    %v355 = vadd.f32 %v241, %v347
    %v356 = vadd.f32 %v242, %v348
    %v357 = vadd.f32 %v243, %v349
    %v358 = vadd.f32 %v244, %v350
    %v359 = vadd.f32 %v245, %v351
    %v360 = vadd.f32 %v246, %v352
    %v361 = vlaneseq
    %v362 = vshrl.u32 %v361, 7
    %vm363 = vcmp.eq.s32.totalorder %v362, 0
    %vm364 = vcmp.eq.s32.totalorder %v362, 1
    %vm365 = vcmp.eq.s32.totalorder %v362, 2
    %vm366 = vcmp.eq.s32.totalorder %v362, 3
    %vm367 = vcmp.eq.s32.totalorder %v362, 4
    %vm368 = vcmp.eq.s32.totalorder %v362, 5
    %vm369 = vcmp.eq.s32.totalorder %v362, 6
    %vm370 = vcmp.eq.s32.totalorder %v362, 7
    %v371 = vsel %vm363, 1, 0
    %v372 = vsel %vm364, 1, 0
    %v373 = vsel %vm365, 1, 0
    %v374 = vsel %vm366, 1, 0
    %v375 = vsel %vm367, 1, 0
    %v376 = vsel %vm368, 1, 0
    %v377 = vsel %vm369, 1, 0
    %v378 = vsel %vm370, 1, 0
    %v379 = vcvt.s32.f32 %v371
    %v380 = vcvt.s32.f32 %v372
    %v381 = vcvt.s32.f32 %v373
    %v382 = vcvt.s32.f32 %v374
    %v383 = vcvt.s32.f32 %v375
    %v384 = vcvt.s32.f32 %v376
    %v385 = vcvt.s32.f32 %v377
    %v386 = vcvt.s32.f32 %v378
    %v387 = vsub.f32 1.0, %v379
    %v388 = vsub.f32 1.0, %v380
    %v389 = vsub.f32 1.0, %v381
    %v390 = vsub.f32 1.0, %v382
    %v391 = vsub.f32 1.0, %v383
    %v392 = vsub.f32 1.0, %v384
    %v393 = vsub.f32 1.0, %v385
    %v394 = vsub.f32 1.0, %v386
    %v395 = vadd.f32 %v353, %v379
    %v396 = vadd.f32 %v354, %v380
    %v397 = vadd.f32 %v355, %v381
    %v398 = vadd.f32 %v356, %v382
    %v399 = vadd.f32 %v357, %v383
    %v400 = vadd.f32 %v358, %v384
    %v401 = vadd.f32 %v359, %v385
    %v402 = vadd.f32 %v360, %v386
    %v403 = vrsqrt.pop %v395
    %v404 = vrsqrt.pop %v396
    %v405 = vrsqrt.pop %v397
    %v406 = vrsqrt.pop %v398
    %v407 = vrsqrt.pop %v399
    %v408 = vrsqrt.pop %v400
    %v409 = vrsqrt.pop %v401
    %v410 = vrsqrt.pop %v402
    %v411 = vmul.f32 %v387, %v403
    %v412 = vmul.f32 %v388, %v404
    %v413 = vmul.f32 %v389, %v405
    %v414 = vmul.f32 %v390, %v406
    %v415 = vmul.f32 %v391, %v407
    %v416 = vmul.f32 %v392, %v408
    %v417 = vmul.f32 %v393, %v409
    %v418 = vmul.f32 %v394, %v410
    %v419 = vmul.f32 %v411, %v117
    %v420 = vmul.f32 %v412, %v118
    %v421 = vmul.f32 %v413, %v119
    %v422 = vmul.f32 %v414, %v120
    %v423 = vmul.f32 %v415, %v121
    %v424 = vmul.f32 %v416, %v122
    %v425 = vmul.f32 %v417, %v123
    %v426 = vmul.f32 %v418, %v124
    %vm427 = vcmask 31744
    %v428 = vsel %vm427, %v419, 0.0
    %v429 = vrot.slane %v428, 4
    %v430 = vadd.f32 %v428, %v429
    %v431 = vrot.slane %v430, 2
    %v432 = vadd.f32 %v430, %v431
    %v433 = vrot.slane %v432, 1
    %v434 = vadd.f32 %v432, %v433
    %v435 = vsel %vm427, %v420, 0.0
    %v436 = vrot.slane %v435, 4
    %v437 = vadd.f32 %v435, %v436
    %v438 = vrot.slane %v437, 2
    %v439 = vadd.f32 %v437, %v438
    %v440 = vrot.slane %v439, 1
    %v441 = vadd.f32 %v439, %v440
    %v442 = vsel %vm427, %v421, 0.0
    %v443 = vrot.slane %v442, 4
    %v444 = vadd.f32 %v442, %v443
    %v445 = vrot.slane %v444, 2
    %v446 = vadd.f32 %v444, %v445
    %v447 = vrot.slane %v446, 1
    %v448 = vadd.f32 %v446, %v447
    %v449 = vsel %vm427, %v422, 0.0
    %v450 = vrot.slane %v449, 4
    %v451 = vadd.f32 %v449, %v450
    %v452 = vrot.slane %v451, 2
    %v453 = vadd.f32 %v451, %v452
    %v454 = vrot.slane %v453, 1
    %v455 = vadd.f32 %v453, %v454
    %v456 = vsel %vm427, %v423, 0.0
    %v457 = vrot.slane %v456, 4
    %v458 = vadd.f32 %v456, %v457
    %v459 = vrot.slane %v458, 2
    %v460 = vadd.f32 %v458, %v459
    %v461 = vrot.slane %v460, 1
    %v462 = vadd.f32 %v460, %v461
    %v463 = vsel %vm427, %v424, 0.0
    %v464 = vrot.slane %v463, 4
    %v465 = vadd.f32 %v463, %v464
    %v466 = vrot.slane %v465, 2
    %v467 = vadd.f32 %v465, %v466
    %v468 = vrot.slane %v467, 1
    %v469 = vadd.f32 %v467, %v468
    %v470 = vsel %vm427, %v425, 0.0
    %v471 = vrot.slane %v470, 4
    %v472 = vadd.f32 %v470, %v471
    %v473 = vrot.slane %v472, 2
    %v474 = vadd.f32 %v472, %v473
    %v475 = vrot.slane %v474, 1
    %v476 = vadd.f32 %v474, %v475
    %v477 = vsel %vm427, %v426, 0.0
    %v478 = vrot.slane %v477, 4
    %v479 = vadd.f32 %v477, %v478
    %v480 = vrot.slane %v479, 2
    %v481 = vadd.f32 %v479, %v480
    %v482 = vrot.slane %v481, 1
    %v483 = vadd.f32 %v481, %v482
    %s484 = sld [smem:[#allocation2]]
    %v485 = vstv %s484
    %v486 = vmul.f32 %v485, %v434
    %v487 = vmul.f32 %v485, %v441
    %v488 = vmul.f32 %v485, %v448
    %v489 = vmul.f32 %v485, %v455
    %v490 = vmul.f32 %v485, %v462
    %v491 = vmul.f32 %v485, %v469
    %v492 = vmul.f32 %v485, %v476
    %v493 = vmul.f32 %v485, %v483
    %vm502 = vcmask 1041409
    %v503 = vsel %vm502, %v487, %v486
    %vm504 = vcmask 1042434
    %v505 = vsel %vm504, %v488, %v503
    %vm506 = vcmask 1043459
    %v507 = vsel %vm506, %v489, %v505
    %vm508 = vcmask 1044484
    %v509 = vsel %vm508, %v490, %v507
    %vm510 = vcmask 1045509
    %v511 = vsel %vm510, %v491, %v509
    %vm512 = vcmask 1046534
    %v513 = vsel %vm512, %v492, %v511
    %vm514 = vcmask 1047559
    %v515 = vsel %vm514, %v493, %v513
    %v517 = vadd.f32 %v24, %v515
    %518 = vst.msk [vmem:[%s2] sm:$0xff] %vm427, %v517
    %s519 = sld [smem:[#allocation2 + $0x1]]
    %v520 = vstv %s519
    %v521 = vmul.f32 %v520, %v434
    %v522 = vmul.f32 %v520, %v441
    %v523 = vmul.f32 %v520, %v448
    %v524 = vmul.f32 %v520, %v455
    %v525 = vmul.f32 %v520, %v462
    %v526 = vmul.f32 %v520, %v469
    %v527 = vmul.f32 %v520, %v476
    %v528 = vmul.f32 %v520, %v483
    %v537 = vsel %vm502, %v522, %v521
    %v538 = vsel %vm504, %v523, %v537
    %v539 = vsel %vm506, %v524, %v538
    %v540 = vsel %vm508, %v525, %v539
    %v541 = vsel %vm510, %v526, %v540
    %v542 = vsel %vm512, %v527, %v541
    %v543 = vsel %vm514, %v528, %v542
    %v545 = vadd.f32 %v24, %v543
    %s546 = scalar_lea.vmem %s2, 8
    %547 = vst.msk [vmem:[%s546] sm:$0xff] %vm427, %v545
    %s548 = sld [smem:[#allocation2 + $0x2]]
    %v549 = vstv %s548
    %v550 = vmul.f32 %v549, %v434
    %v551 = vmul.f32 %v549, %v441
    %v552 = vmul.f32 %v549, %v448
    %v553 = vmul.f32 %v549, %v455
    %v554 = vmul.f32 %v549, %v462
    %v555 = vmul.f32 %v549, %v469
    %v556 = vmul.f32 %v549, %v476
    %v557 = vmul.f32 %v549, %v483
    %v566 = vsel %vm502, %v551, %v550
    %v567 = vsel %vm504, %v552, %v566
    %v568 = vsel %vm506, %v553, %v567
    %v569 = vsel %vm508, %v554, %v568
    %v570 = vsel %vm510, %v555, %v569
    %v571 = vsel %vm512, %v556, %v570
    %v572 = vsel %vm514, %v557, %v571
    %v574 = vadd.f32 %v24, %v572
    %s575 = scalar_lea.vmem %s2, 16
    %576 = vst.msk [vmem:[%s575] sm:$0xff] %vm427, %v574
    %s577 = sld [smem:[#allocation2 + $0x3]]
    %v578 = vstv %s577
    %v579 = vmul.f32 %v578, %v434
    %v580 = vmul.f32 %v578, %v441
    %v581 = vmul.f32 %v578, %v448
    %v582 = vmul.f32 %v578, %v455
    %v583 = vmul.f32 %v578, %v462
    %v584 = vmul.f32 %v578, %v469
    %v585 = vmul.f32 %v578, %v476
    %v586 = vmul.f32 %v578, %v483
    %v595 = vsel %vm502, %v580, %v579
    %v596 = vsel %vm504, %v581, %v595
    %v597 = vsel %vm506, %v582, %v596
    %v598 = vsel %vm508, %v583, %v597
    %v599 = vsel %vm510, %v584, %v598
    %v600 = vsel %vm512, %v585, %v599
    %v601 = vsel %vm514, %v586, %v600
    %v603 = vadd.f32 %v24, %v601
    %s604 = scalar_lea.vmem %s2, 24
    %605 = vst.msk [vmem:[%s604] sm:$0xff] %vm427, %v603
    %s606 = sld [smem:[#allocation2 + $0x4]]
    %v607 = vstv %s606
    %v608 = vmul.f32 %v607, %v434
    %v609 = vmul.f32 %v607, %v441
    %v610 = vmul.f32 %v607, %v448
    %v611 = vmul.f32 %v607, %v455
    %v612 = vmul.f32 %v607, %v462
    %v613 = vmul.f32 %v607, %v469
    %v614 = vmul.f32 %v607, %v476
    %v615 = vmul.f32 %v607, %v483
    %v624 = vsel %vm502, %v609, %v608
    %v625 = vsel %vm504, %v610, %v624
    %v626 = vsel %vm506, %v611, %v625
    %v627 = vsel %vm508, %v612, %v626
    %v628 = vsel %vm510, %v613, %v627
    %v629 = vsel %vm512, %v614, %v628
    %v630 = vsel %vm514, %v615, %v629
    %v632 = vadd.f32 %v24, %v630
    %s633 = scalar_lea.vmem %s2, 32
    %634 = vst.msk [vmem:[%s633] sm:$0xff] %vm427, %v632
    %s635 = sld [smem:[#allocation2 + $0x5]]
    %v636 = vstv %s635
    %v637 = vmul.f32 %v636, %v434
    %v638 = vmul.f32 %v636, %v441
    %v639 = vmul.f32 %v636, %v448
    %v640 = vmul.f32 %v636, %v455
    %v641 = vmul.f32 %v636, %v462
    %v642 = vmul.f32 %v636, %v469
    %v643 = vmul.f32 %v636, %v476
    %v644 = vmul.f32 %v636, %v483
    %v653 = vsel %vm502, %v638, %v637
    %v654 = vsel %vm504, %v639, %v653
    %v655 = vsel %vm506, %v640, %v654
    %v656 = vsel %vm508, %v641, %v655
    %v657 = vsel %vm510, %v642, %v656
    %v658 = vsel %vm512, %v643, %v657
    %v659 = vsel %vm514, %v644, %v658
    %v661 = vadd.f32 %v24, %v659
    %s662 = scalar_lea.vmem %s2, 40
    %663 = vst.msk [vmem:[%s662] sm:$0xff] %vm427, %v661
    %v664 = vmul.f32 %v411, %v223
    %v665 = vmul.f32 %v412, %v224
    %v666 = vmul.f32 %v413, %v225
    %v667 = vmul.f32 %v414, %v226
    %v668 = vmul.f32 %v415, %v227
    %v669 = vmul.f32 %v416, %v228
    %v670 = vmul.f32 %v417, %v229
    %v671 = vmul.f32 %v418, %v230
    %v672 = vsel %vm427, %v664, 0.0
    %v673 = vrot.slane %v672, 4
    %v674 = vadd.f32 %v672, %v673
    %v675 = vrot.slane %v674, 2
    %v676 = vadd.f32 %v674, %v675
    %v677 = vrot.slane %v676, 1
    %v678 = vadd.f32 %v676, %v677
    %v679 = vsel %vm427, %v665, 0.0
    %v680 = vrot.slane %v679, 4
    %v681 = vadd.f32 %v679, %v680
    %v682 = vrot.slane %v681, 2
    %v683 = vadd.f32 %v681, %v682
    %v684 = vrot.slane %v683, 1
    %v685 = vadd.f32 %v683, %v684
    %v686 = vsel %vm427, %v666, 0.0
    %v687 = vrot.slane %v686, 4
    %v688 = vadd.f32 %v686, %v687
    %v689 = vrot.slane %v688, 2
    %v690 = vadd.f32 %v688, %v689
    %v691 = vrot.slane %v690, 1
    %v692 = vadd.f32 %v690, %v691
    %v693 = vsel %vm427, %v667, 0.0
    %v694 = vrot.slane %v693, 4
    %v695 = vadd.f32 %v693, %v694
    %v696 = vrot.slane %v695, 2
    %v697 = vadd.f32 %v695, %v696
    %v698 = vrot.slane %v697, 1
    %v699 = vadd.f32 %v697, %v698
    %v700 = vsel %vm427, %v668, 0.0
    %v701 = vrot.slane %v700, 4
    %v702 = vadd.f32 %v700, %v701
    %v703 = vrot.slane %v702, 2
    %v704 = vadd.f32 %v702, %v703
    %v705 = vrot.slane %v704, 1
    %v706 = vadd.f32 %v704, %v705
    %v707 = vsel %vm427, %v669, 0.0
    %v708 = vrot.slane %v707, 4
    %v709 = vadd.f32 %v707, %v708
    %v710 = vrot.slane %v709, 2
    %v711 = vadd.f32 %v709, %v710
    %v712 = vrot.slane %v711, 1
    %v713 = vadd.f32 %v711, %v712
    %v714 = vsel %vm427, %v670, 0.0
    %v715 = vrot.slane %v714, 4
    %v716 = vadd.f32 %v714, %v715
    %v717 = vrot.slane %v716, 2
    %v718 = vadd.f32 %v716, %v717
    %v719 = vrot.slane %v718, 1
    %v720 = vadd.f32 %v718, %v719
    %v721 = vsel %vm427, %v671, 0.0
    %v722 = vrot.slane %v721, 4
    %v723 = vadd.f32 %v721, %v722
    %v724 = vrot.slane %v723, 2
    %v725 = vadd.f32 %v723, %v724
    %v726 = vrot.slane %v725, 1
    %v727 = vadd.f32 %v725, %v726
    %s728 = sld [smem:[#allocation2]]
    %v729 = vstv %s728
    %v730 = vmul.f32 %v729, %v678
    %v731 = vmul.f32 %v729, %v685
    %v732 = vmul.f32 %v729, %v692
    %v733 = vmul.f32 %v729, %v699
    %v734 = vmul.f32 %v729, %v706
    %v735 = vmul.f32 %v729, %v713
    %v736 = vmul.f32 %v729, %v720
    %v737 = vmul.f32 %v729, %v727
    %v746 = vsel %vm502, %v731, %v730
    %v747 = vsel %vm504, %v732, %v746
    %v748 = vsel %vm506, %v733, %v747
    %v749 = vsel %vm508, %v734, %v748
    %v750 = vsel %vm510, %v735, %v749
    %v751 = vsel %vm512, %v736, %v750
    %v752 = vsel %vm514, %v737, %v751
    %v754 = vadd.f32 %v25, %v752
    %s755 = scalar_lea.vmem %s2, 48
    %756 = vst.msk [vmem:[%s755] sm:$0xff] %vm427, %v754
    %s757 = sld [smem:[#allocation2 + $0x1]]
    %v758 = vstv %s757
    %v759 = vmul.f32 %v758, %v678
    %v760 = vmul.f32 %v758, %v685
    %v761 = vmul.f32 %v758, %v692
    %v762 = vmul.f32 %v758, %v699
    %v763 = vmul.f32 %v758, %v706
    %v764 = vmul.f32 %v758, %v713
    %v765 = vmul.f32 %v758, %v720
    %v766 = vmul.f32 %v758, %v727
    %v775 = vsel %vm502, %v760, %v759
    %v776 = vsel %vm504, %v761, %v775
    %v777 = vsel %vm506, %v762, %v776
    %v778 = vsel %vm508, %v763, %v777
    %v779 = vsel %vm510, %v764, %v778
    %v780 = vsel %vm512, %v765, %v779
    %v781 = vsel %vm514, %v766, %v780
    %v783 = vadd.f32 %v25, %v781
    %s784 = scalar_lea.vmem %s2, 56
    %785 = vst.msk [vmem:[%s784] sm:$0xff] %vm427, %v783
    %s786 = sld [smem:[#allocation2 + $0x2]]
    %v787 = vstv %s786
    %v788 = vmul.f32 %v787, %v678
    %v789 = vmul.f32 %v787, %v685
    %v790 = vmul.f32 %v787, %v692
    %v791 = vmul.f32 %v787, %v699
    %v792 = vmul.f32 %v787, %v706
    %v793 = vmul.f32 %v787, %v713
    %v794 = vmul.f32 %v787, %v720
    %v795 = vmul.f32 %v787, %v727
    %v804 = vsel %vm502, %v789, %v788
    %v805 = vsel %vm504, %v790, %v804
    %v806 = vsel %vm506, %v791, %v805
    %v807 = vsel %vm508, %v792, %v806
    %v808 = vsel %vm510, %v793, %v807
    %v809 = vsel %vm512, %v794, %v808
    %v810 = vsel %vm514, %v795, %v809
    %v812 = vadd.f32 %v25, %v810
    %s813 = scalar_lea.vmem %s2, 64
    %814 = vst.msk [vmem:[%s813] sm:$0xff] %vm427, %v812
    %s815 = sld [smem:[#allocation2 + $0x3]]
    %v816 = vstv %s815
    %v817 = vmul.f32 %v816, %v678
    %v818 = vmul.f32 %v816, %v685
    %v819 = vmul.f32 %v816, %v692
    %v820 = vmul.f32 %v816, %v699
    %v821 = vmul.f32 %v816, %v706
    %v822 = vmul.f32 %v816, %v713
    %v823 = vmul.f32 %v816, %v720
    %v824 = vmul.f32 %v816, %v727
    %v833 = vsel %vm502, %v818, %v817
    %v834 = vsel %vm504, %v819, %v833
    %v835 = vsel %vm506, %v820, %v834
    %v836 = vsel %vm508, %v821, %v835
    %v837 = vsel %vm510, %v822, %v836
    %v838 = vsel %vm512, %v823, %v837
    %v839 = vsel %vm514, %v824, %v838
    %v841 = vadd.f32 %v25, %v839
    %s842 = scalar_lea.vmem %s2, 72
    %843 = vst.msk [vmem:[%s842] sm:$0xff] %vm427, %v841
    %s844 = sld [smem:[#allocation2 + $0x4]]
    %v845 = vstv %s844
    %v846 = vmul.f32 %v845, %v678
    %v847 = vmul.f32 %v845, %v685
    %v848 = vmul.f32 %v845, %v692
    %v849 = vmul.f32 %v845, %v699
    %v850 = vmul.f32 %v845, %v706
    %v851 = vmul.f32 %v845, %v713
    %v852 = vmul.f32 %v845, %v720
    %v853 = vmul.f32 %v845, %v727
    %v862 = vsel %vm502, %v847, %v846
    %v863 = vsel %vm504, %v848, %v862
    %v864 = vsel %vm506, %v849, %v863
    %v865 = vsel %vm508, %v850, %v864
    %v866 = vsel %vm510, %v851, %v865
    %v867 = vsel %vm512, %v852, %v866
    %v868 = vsel %vm514, %v853, %v867
    %v870 = vadd.f32 %v25, %v868
    %s871 = scalar_lea.vmem %s2, 80
    %872 = vst.msk [vmem:[%s871] sm:$0xff] %vm427, %v870
    %s873 = sld [smem:[#allocation2 + $0x5]]
    %v874 = vstv %s873
    %v875 = vmul.f32 %v874, %v678
    %v876 = vmul.f32 %v874, %v685
    %v877 = vmul.f32 %v874, %v692
    %v878 = vmul.f32 %v874, %v699
    %v879 = vmul.f32 %v874, %v706
    %v880 = vmul.f32 %v874, %v713
    %v881 = vmul.f32 %v874, %v720
    %v882 = vmul.f32 %v874, %v727
    %v891 = vsel %vm502, %v876, %v875
    %v892 = vsel %vm504, %v877, %v891
    %v893 = vsel %vm506, %v878, %v892
    %v894 = vsel %vm508, %v879, %v893
    %v895 = vsel %vm510, %v880, %v894
    %v896 = vsel %vm512, %v881, %v895
    %v897 = vsel %vm514, %v882, %v896
    %v899 = vadd.f32 %v25, %v897
    %s900 = scalar_lea.vmem %s2, 88
    %901 = vst.msk [vmem:[%s900] sm:$0xff] %vm427, %v899
    %v902 = vmul.f32 %v411, %v337
    %v903 = vmul.f32 %v412, %v338
    %v904 = vmul.f32 %v413, %v339
    %v905 = vmul.f32 %v414, %v340
    %v906 = vmul.f32 %v415, %v341
    %v907 = vmul.f32 %v416, %v342
    %v908 = vmul.f32 %v417, %v343
    %v909 = vmul.f32 %v418, %v344
    %v910 = vsel %vm427, %v902, 0.0
    %v911 = vrot.slane %v910, 4
    %v912 = vadd.f32 %v910, %v911
    %v913 = vrot.slane %v912, 2
    %v914 = vadd.f32 %v912, %v913
    %v915 = vrot.slane %v914, 1
    %v916 = vadd.f32 %v914, %v915
    %v917 = vsel %vm427, %v903, 0.0
    %v918 = vrot.slane %v917, 4
    %v919 = vadd.f32 %v917, %v918
    %v920 = vrot.slane %v919, 2
    %v921 = vadd.f32 %v919, %v920
    %v922 = vrot.slane %v921, 1
    %v923 = vadd.f32 %v921, %v922
    %v924 = vsel %vm427, %v904, 0.0
    %v925 = vrot.slane %v924, 4
    %v926 = vadd.f32 %v924, %v925
    %v927 = vrot.slane %v926, 2
    %v928 = vadd.f32 %v926, %v927
    %v929 = vrot.slane %v928, 1
    %v930 = vadd.f32 %v928, %v929
    %v931 = vsel %vm427, %v905, 0.0
    %v932 = vrot.slane %v931, 4
    %v933 = vadd.f32 %v931, %v932
    %v934 = vrot.slane %v933, 2
    %v935 = vadd.f32 %v933, %v934
    %v936 = vrot.slane %v935, 1
    %v937 = vadd.f32 %v935, %v936
    %v938 = vsel %vm427, %v906, 0.0
    %v939 = vrot.slane %v938, 4
    %v940 = vadd.f32 %v938, %v939
    %v941 = vrot.slane %v940, 2
    %v942 = vadd.f32 %v940, %v941
    %v943 = vrot.slane %v942, 1
    %v944 = vadd.f32 %v942, %v943
    %v945 = vsel %vm427, %v907, 0.0
    %v946 = vrot.slane %v945, 4
    %v947 = vadd.f32 %v945, %v946
    %v948 = vrot.slane %v947, 2
    %v949 = vadd.f32 %v947, %v948
    %v950 = vrot.slane %v949, 1
    %v951 = vadd.f32 %v949, %v950
    %v952 = vsel %vm427, %v908, 0.0
    %v953 = vrot.slane %v952, 4
    %v954 = vadd.f32 %v952, %v953
    %v955 = vrot.slane %v954, 2
    %v956 = vadd.f32 %v954, %v955
    %v957 = vrot.slane %v956, 1
    %v958 = vadd.f32 %v956, %v957
    %v959 = vsel %vm427, %v909, 0.0
    %v960 = vrot.slane %v959, 4
    %v961 = vadd.f32 %v959, %v960
    %v962 = vrot.slane %v961, 2
    %v963 = vadd.f32 %v961, %v962
    %v964 = vrot.slane %v963, 1
    %v965 = vadd.f32 %v963, %v964
    %s966 = sld [smem:[#allocation2]]
    %v967 = vstv %s966
    %v968 = vmul.f32 %v967, %v916
    %v969 = vmul.f32 %v967, %v923
    %v970 = vmul.f32 %v967, %v930
    %v971 = vmul.f32 %v967, %v937
    %v972 = vmul.f32 %v967, %v944
    %v973 = vmul.f32 %v967, %v951
    %v974 = vmul.f32 %v967, %v958
    %v975 = vmul.f32 %v967, %v965
    %v984 = vsel %vm502, %v969, %v968
    %v985 = vsel %vm504, %v970, %v984
    %v986 = vsel %vm506, %v971, %v985
    %v987 = vsel %vm508, %v972, %v986
    %v988 = vsel %vm510, %v973, %v987
    %v989 = vsel %vm512, %v974, %v988
    %v990 = vsel %vm514, %v975, %v989
    %v992 = vadd.f32 %v26, %v990
    %s993 = scalar_lea.vmem %s2, 96
    %994 = vst.msk [vmem:[%s993] sm:$0xff] %vm427, %v992
    %s995 = sld [smem:[#allocation2 + $0x1]]
    %v996 = vstv %s995
    %v997 = vmul.f32 %v996, %v916
    %v998 = vmul.f32 %v996, %v923
    %v999 = vmul.f32 %v996, %v930
    %v1000 = vmul.f32 %v996, %v937
    %v1001 = vmul.f32 %v996, %v944
    %v1002 = vmul.f32 %v996, %v951
    %v1003 = vmul.f32 %v996, %v958
    %v1004 = vmul.f32 %v996, %v965
    %v1013 = vsel %vm502, %v998, %v997
    %v1014 = vsel %vm504, %v999, %v1013
    %v1015 = vsel %vm506, %v1000, %v1014
    %v1016 = vsel %vm508, %v1001, %v1015
    %v1017 = vsel %vm510, %v1002, %v1016
    %v1018 = vsel %vm512, %v1003, %v1017
    %v1019 = vsel %vm514, %v1004, %v1018
    %v1021 = vadd.f32 %v26, %v1019
    %s1022 = scalar_lea.vmem %s2, 104
    %1023 = vst.msk [vmem:[%s1022] sm:$0xff] %vm427, %v1021
    %s1024 = sld [smem:[#allocation2 + $0x2]]
    %v1025 = vstv %s1024
    %v1026 = vmul.f32 %v1025, %v916
    %v1027 = vmul.f32 %v1025, %v923
    %v1028 = vmul.f32 %v1025, %v930
    %v1029 = vmul.f32 %v1025, %v937
    %v1030 = vmul.f32 %v1025, %v944
    %v1031 = vmul.f32 %v1025, %v951
    %v1032 = vmul.f32 %v1025, %v958
    %v1033 = vmul.f32 %v1025, %v965
    %v1042 = vsel %vm502, %v1027, %v1026
    %v1043 = vsel %vm504, %v1028, %v1042
    %v1044 = vsel %vm506, %v1029, %v1043
    %v1045 = vsel %vm508, %v1030, %v1044
    %v1046 = vsel %vm510, %v1031, %v1045
    %v1047 = vsel %vm512, %v1032, %v1046
    %v1048 = vsel %vm514, %v1033, %v1047
    %v1050 = vadd.f32 %v26, %v1048
    %s1051 = scalar_lea.vmem %s2, 112
    %1052 = vst.msk [vmem:[%s1051] sm:$0xff] %vm427, %v1050
    %s1053 = sld [smem:[#allocation2 + $0x3]]
    %v1054 = vstv %s1053
    %v1055 = vmul.f32 %v1054, %v916
    %v1056 = vmul.f32 %v1054, %v923
    %v1057 = vmul.f32 %v1054, %v930
    %v1058 = vmul.f32 %v1054, %v937
    %v1059 = vmul.f32 %v1054, %v944
    %v1060 = vmul.f32 %v1054, %v951
    %v1061 = vmul.f32 %v1054, %v958
    %v1062 = vmul.f32 %v1054, %v965
    %v1071 = vsel %vm502, %v1056, %v1055
    %v1072 = vsel %vm504, %v1057, %v1071
    %v1073 = vsel %vm506, %v1058, %v1072
    %v1074 = vsel %vm508, %v1059, %v1073
    %v1075 = vsel %vm510, %v1060, %v1074
    %v1076 = vsel %vm512, %v1061, %v1075
    %v1077 = vsel %vm514, %v1062, %v1076
    %v1079 = vadd.f32 %v26, %v1077
    %s1080 = scalar_lea.vmem %s2, 120
    %1081 = vst.msk [vmem:[%s1080] sm:$0xff] %vm427, %v1079
    %s1082 = sld [smem:[#allocation2 + $0x4]]
    %v1083 = vstv %s1082
    %v1084 = vmul.f32 %v1083, %v916
    %v1085 = vmul.f32 %v1083, %v923
    %v1086 = vmul.f32 %v1083, %v930
    %v1087 = vmul.f32 %v1083, %v937
    %v1088 = vmul.f32 %v1083, %v944
    %v1089 = vmul.f32 %v1083, %v951
    %v1090 = vmul.f32 %v1083, %v958
    %v1091 = vmul.f32 %v1083, %v965
    %v1100 = vsel %vm502, %v1085, %v1084
    %v1101 = vsel %vm504, %v1086, %v1100
    %v1102 = vsel %vm506, %v1087, %v1101
    %v1103 = vsel %vm508, %v1088, %v1102
    %v1104 = vsel %vm510, %v1089, %v1103
    %v1105 = vsel %vm512, %v1090, %v1104
    %v1106 = vsel %vm514, %v1091, %v1105
    %v1108 = vadd.f32 %v26, %v1106
    %s1109 = scalar_lea.vmem %s2, 128
    %1110 = vst.msk [vmem:[%s1109] sm:$0xff] %vm427, %v1108
    %s1111 = sld [smem:[#allocation2 + $0x5]]
    %v1112 = vstv %s1111
    %v1113 = vmul.f32 %v1112, %v916
    %v1114 = vmul.f32 %v1112, %v923
    %v1115 = vmul.f32 %v1112, %v930
    %v1116 = vmul.f32 %v1112, %v937
    %v1117 = vmul.f32 %v1112, %v944
    %v1118 = vmul.f32 %v1112, %v951
    %v1119 = vmul.f32 %v1112, %v958
    %v1120 = vmul.f32 %v1112, %v965
    %v1129 = vsel %vm502, %v1114, %v1113
    %v1130 = vsel %vm504, %v1115, %v1129
    %v1131 = vsel %vm506, %v1116, %v1130
    %v1132 = vsel %vm508, %v1117, %v1131
    %v1133 = vsel %vm510, %v1118, %v1132
    %v1134 = vsel %vm512, %v1119, %v1133
    %v1135 = vsel %vm514, %v1120, %v1134
    %v1137 = vadd.f32 %v26, %v1135
    %s1138 = scalar_lea.vmem %s2, 136
    %1139 = vst.msk [vmem:[%s1138] sm:$0xff] %vm427, %v1137
    // Predicated region
    $region14: #{tpu_custom_call.1} parent=1 // pred_check
      _
    $region15: #{tpu_custom_call.1} parent=1 // pred_check_branch
      %1141 = sbr.rel (0) target = $region17
    $region16: #{tpu_custom_call.1} parent=1 // pred_region
      _
    $region17: #{tpu_custom_call.1} parent=1 // pred_fallthru
      _
    // Predicated region
    $region18: #{tpu_custom_call.1} parent=1 // pred_check
      _
    $region19: #{tpu_custom_call.1} parent=1 // pred_check_branch
      %1143 = sbr.rel (0) target = $region21
    $region20: #{tpu_custom_call.1} parent=1 // pred_region
      _
    $region21: #{tpu_custom_call.1} parent=1 // pred_fallthru
      _
    %1144 = vsyncpa [#allocation3], 1

</llo_original>
